<compile_context>
chip_gen: v7x
topology: tpu7x:2x2x1
jax: 0.10.0
libtpu: 0.0.40
codegen_flags: <defaults>
</compile_context>

<pallas_src>
import math
from typing import NamedTuple, Optional

import jax
import jax.numpy as jnp
from jax.experimental import pallas as pl
from jax.experimental.pallas import tpu as pltpu


def _round_up(x: int, m: int) -> int:
    return ((x + m - 1) // m) * m


def _pick_tile(dim: int, t_max: int, align: int):
    """Largest tile (multiple of `align`, <= t_max) that minimizes round_up(dim, tile)."""
    best_t, best_pad = align, _round_up(dim, align)
    t = align
    while t <= t_max:
        pad = _round_up(dim, t)
        if pad <= best_pad:          # prefer larger tiles at equal padding
            best_t, best_pad = t, pad
        t *= 2
    return best_t, best_pad


# ----------------------------------------------------------------------------
# Kernels
# ----------------------------------------------------------------------------
def _classifier_kernel_accum_out(x_ref, w_ref, b_ref, o_ref):
    """f32-output path: accumulate directly into the resident output block.

    x_ref: (tm, tk)  activation tile
    w_ref: (tk, tn)  pre-transposed weight tile (H, C layout)
    b_ref: (1, tn)   bias tile
    o_ref: (tm, tn)  f32 output tile (revisited across the K grid axis)
    """
    k = pl.program_id(2)

    @pl.when(k == 0)
    def _():
        o_ref[...] = jnp.broadcast_to(b_ref[...], o_ref.shape).astype(o_ref.dtype)

    o_ref[...] += jnp.dot(x_ref[...], w_ref[...],
                          preferred_element_type=jnp.float32)


def _classifier_kernel_scratch(x_ref, w_ref, b_ref, o_ref, acc_ref):
    """Narrow-output path: f32 VMEM accumulator, cast + bias in the epilogue."""
    k = pl.program_id(2)

    @pl.when(k == 0)
    def _():
        acc_ref[...] = jnp.zeros_like(acc_ref)

    acc_ref[...] += jnp.dot(x_ref[...], w_ref[...],
                            preferred_element_type=jnp.float32)

    @pl.when(k == pl.num_programs(2) - 1)
    def _():
        o_ref[...] = (acc_ref[...] + b_ref[...].astype(jnp.float32)).astype(o_ref.dtype)


# ----------------------------------------------------------------------------
# Parameter preparation (run ONCE, outside the hot path)
# ----------------------------------------------------------------------------
class ClassifierParams(NamedTuple):
    w_t: jax.Array      # (H_pad, C_pad) pre-transposed, pre-padded weight
    b2d: jax.Array      # (1, C_pad)     pre-padded bias
    num_hidden: int     # original H
    num_class: int      # original C
    tn: int             # class-dim tile
    tk: int             # hidden-dim tile


def prepare_classifier_params(weight, bias, *, tn=1024, tk=1024,
                              compute_dtype: Optional[jnp.dtype] = None):
    """weight: (C, H) nn.Linear layout, bias: (C,).  Pads/transposes once."""
    C, H = weight.shape
    tn_eff, C_pad = _pick_tile(C, tn, 128)
    tk_eff, H_pad = _pick_tile(H, tk, 128)

    w_t = weight.T                                   # (H, C) — one-time transpose
    if compute_dtype is not None:
        w_t = w_t.astype(compute_dtype)
    if (H_pad, C_pad) != (H, C):
        w_t = jnp.pad(w_t, ((0, H_pad - H), (0, C_pad - C)))

    b2d = bias.reshape(1, C)
    if C_pad != C:
        b2d = jnp.pad(b2d, ((0, 0), (0, C_pad - C)))

    return ClassifierParams(w_t, b2d, H, C, tn_eff, tk_eff)


# ----------------------------------------------------------------------------
# Forward (hot path)
# ----------------------------------------------------------------------------
def classifier_apply(params: ClassifierParams, feature, *, tm=256,
                     compute_dtype: Optional[jnp.dtype] = None, w_buffers=2):
    """nn.Linear semantics: feature (..., H) -> (..., C)."""
    orig_shape = feature.shape
    H = orig_shape[-1]
    assert H == params.num_hidden, "feature hidden dim mismatch"
    C = params.num_class
    H_pad, C_pad = params.w_t.shape
    tn, tk = params.tn, params.tk

    x2d = feature.reshape(-1, H)
    B = x2d.shape[0]

    x_dtype = jnp.dtype(compute_dtype) if compute_dtype is not None else x2d.dtype
    x_itemsize = x_dtype.itemsize
    sub_align = {4: 8, 2: 16, 1: 32}.get(x_itemsize, 8)
    tm_eff, B_pad = _pick_tile(B, tm, sub_align)

    x_p = x2d
    if compute_dtype is not None:
        x_p = x_p.astype(compute_dtype)
    if (B_pad, H_pad) != (B, H):
        x_p = jnp.pad(x_p, ((0, B_pad - B), (0, H_pad - H)))

    out_dtype = feature.dtype
    accumulate_in_out = jnp.dtype(out_dtype) == jnp.dtype(jnp.float32)

    grid = (C_pad // tn, B_pad // tm_eff, H_pad // tk)   # N leading (v7x dual-TC split)

    w_spec_kwargs = {}
    if w_buffers is not None and w_buffers > 2:
        w_spec_kwargs["pipeline_mode"] = pl.Buffered(w_buffers)

    in_specs = [
        pl.BlockSpec((tm_eff, tk), lambda j, i, k: (i, k)),                  # x tile
        pl.BlockSpec((tk, tn), lambda j, i, k: (k, j), **w_spec_kwargs),     # W^T tile
        pl.BlockSpec((1, tn), lambda j, i, k: (0, j)),                       # bias tile
    ]
    out_spec = pl.BlockSpec((tm_eff, tn), lambda j, i, k: (i, j))

    if accumulate_in_out:
        kernel = _classifier_kernel_accum_out
        scratch_shapes = []
    else:
        kernel = _classifier_kernel_scratch
        scratch_shapes = [pltpu.VMEM((tm_eff, tn), jnp.float32)]

    # Explicit VMEM budget (double-buffered inputs/outputs + scratch), capped so it
    # also fits v7x's 64 MiB-per-TC VMEM with headroom.
    w_itemsize = jnp.dtype(params.w_t.dtype).itemsize
    o_itemsize = jnp.dtype(out_dtype).itemsize
    n_wbuf = max(2, w_buffers or 2)
    working = (2 * tm_eff * tk * x_itemsize
               + n_wbuf * tk * tn * w_itemsize
               + 2 * tm_eff * tn * o_itemsize
               + 2 * tn * jnp.dtype(params.b2d.dtype).itemsize)
    if not accumulate_in_out:
        working += tm_eff * tn * 4
    vmem_limit = int(min(max(working + (8 << 20), 32 << 20), 48 << 20))

    cost = pl.CostEstimate(
        flops=2 * B_pad * C_pad * H_pad,
        transcendentals=0,
        bytes_accessed=(B_pad * H_pad * x_itemsize
                        + H_pad * C_pad * w_itemsize * (B_pad // tm_eff)
                        + B_pad * C_pad * o_itemsize),
    )

    out = pl.pallas_call(
        kernel,
        out_shape=jax.ShapeDtypeStruct((B_pad, C_pad), out_dtype),
        grid_spec=pltpu.PrefetchScalarGridSpec(
            num_scalar_prefetch=0,
            grid=grid,
            in_specs=in_specs,
            out_specs=out_spec,
            scratch_shapes=scratch_shapes,
        ),
        compiler_params=pltpu.CompilerParams(
            dimension_semantics=("parallel", "parallel", "arbitrary"),
            vmem_limit_bytes=vmem_limit,
        ),
        cost_estimate=cost,
    )(x_p, params.w_t, params.b2d)

    out = out[:B, :C]
    return out.reshape(*orig_shape[:-1], C)


def classifier_forward(feature, weight, bias, *, tm=256, tn=1024, tk=1024,
                       compute_dtype: Optional[jnp.dtype] = None):
    """One-shot convenience wrapper (prepares params inline)."""
    params = prepare_classifier_params(weight, bias, tn=tn, tk=tk,
                                       compute_dtype=compute_dtype)
    return classifier_apply(params, feature, tm=tm, compute_dtype=compute_dtype)


def init_classifier_params(key, num_hidden, num_class, dtype=jnp.float32):
    """Deterministic init mimicking nn.Linear defaults (uniform(-1/sqrt(H), 1/sqrt(H)))."""
    kw, kb = jax.random.split(key)
    bound = 1.0 / math.sqrt(num_hidden)
    weight = jax.random.uniform(kw, (num_class, num_hidden), dtype,
                                minval=-bound, maxval=bound)
    bias = jax.random.uniform(kb, (num_class,), dtype,
                              minval=-bound, maxval=bound)
    return weight, bias


if __name__ == "__main__":
    key = jax.random.PRNGKey(0)
    k1, k2, k3, k4, k5, k6 = jax.random.split(key, 6)

    # --- Test 1: small shapes matching the module's toy config ----------------
    batch, num_hidden, num_class = 8, 32, 8
    feature = jax.random.normal(k1, (batch, num_hidden), jnp.float32)
    weight, bias = init_classifier_params(k2, num_hidden, num_class)

    params = prepare_classifier_params(weight, bias)          # one-time layout prep
    out = jax.block_until_ready(classifier_apply(params, feature))
    ref = feature @ weight.T + bias
    assert out.shape == (batch, num_class)
    assert jnp.allclose(out, ref, atol=1e-5, rtol=1e-5)

    # --- Test 2: multi-tile grid (j, k > 1) and leading-dim reshape, f32 path --
    B2, H2, C2 = 16, 2048, 1536
    feature2 = jax.random.normal(k3, (2, B2 // 2, H2), jnp.float32)
    weight2, bias2 = init_classifier_params(k4, H2, C2)

    params2 = prepare_classifier_params(weight2, bias2)
    out2 = jax.block_until_ready(classifier_apply(params2, feature2))
    ref2 = feature2.reshape(-1, H2) @ weight2.T + bias2
    assert out2.shape == (2, B2 // 2, C2)
    assert jnp.allclose(out2.reshape(-1, C2), ref2, atol=2e-3, rtol=2e-3)

    # --- Test 3: bf16 path (narrow-output kernel with f32 scratch accumulator) --
    B3, H3, C3 = 8, 256, 128
    feature3 = jax.random.normal(k5, (B3, H3), jnp.float32).astype(jnp.bfloat16)
    weight3, bias3 = init_classifier_params(k6, H3, C3, dtype=jnp.bfloat16)

    params3 = prepare_classifier_params(weight3, bias3)
    out3 = jax.block_until_ready(classifier_apply(params3, feature3))
    ref3 = (feature3.astype(jnp.float32) @ weight3.T.astype(jnp.float32)
            + bias3.astype(jnp.float32))
    assert out3.shape == (B3, C3)
    assert jnp.allclose(out3.astype(jnp.float32), ref3, atol=5e-2, rtol=5e-2)

    print("KERNEL_OK")
</pallas_src>

<mosaic_0001>
module attributes {stable_mosaic.version = 11 : i64} {
  func.func @_classifier_kernel_accum_out(%arg0: i32, %arg1: i32, %arg2: i32, %arg3: memref<8x128xf32, #tpu.memory_space<vmem>>, %arg4: memref<128x128xf32, #tpu.memory_space<vmem>>, %arg5: memref<1x128xf32, #tpu.memory_space<vmem>>, %arg6: memref<8x128xf32, #tpu.memory_space<vmem>>) attributes {dimension_semantics = [#tpu.dimension_semantics<parallel>, #tpu.dimension_semantics<parallel>, #tpu.dimension_semantics<arbitrary>], iteration_bounds = array<i64: 1, 1, 1>, scalar_prefetch = 0 : i64, scratch_operands = 0 : i64, tpu.core_type = #tpu.core_type<tc>, window_params = [{transform_indices = @transform_0, window_bounds = array<i64: 8, 128>}, {transform_indices = @transform_1, window_bounds = array<i64: 128, 128>}, {transform_indices = @transform_2, window_bounds = array<i64: 1, 128>}, {transform_indices = @transform_3, window_bounds = array<i64: 8, 128>}]} {
    %c0_i32 = arith.constant 0 : i32
    %0 = arith.cmpi eq, %arg2, %c0_i32 : i32
    %1 = arith.extui %0 : i1 to i32
    %c0_i32_0 = arith.constant 0 : i32
    %2 = arith.cmpi ne, %1, %c0_i32_0 : i32
    scf.if %2 {
      %c0_8 = arith.constant 0 : index
      %c0_9 = arith.constant 0 : index
      %9 = vector.load %arg5[%c0_8, %c0_9] : memref<1x128xf32, #tpu.memory_space<vmem>>, vector<1x128xf32>
      %10 = vector.shape_cast %9 : vector<1x128xf32> to vector<1x128xf32>
      %11 = vector.broadcast %10 : vector<1x128xf32> to vector<8x128xf32>
      %c0_10 = arith.constant 0 : index
      %c0_11 = arith.constant 0 : index
      %12 = vector.load %arg6[%c0_10, %c0_11] : memref<8x128xf32, #tpu.memory_space<vmem>>, vector<8x128xf32>
      tpu.vector_store %arg6[%c0_10, %c0_11], %11 {strides = array<i32>} : memref<8x128xf32, #tpu.memory_space<vmem>>, vector<8x128xf32>,
    } else {
    }
    %c0 = arith.constant 0 : index
    %c0_1 = arith.constant 0 : index
    %3 = vector.load %arg6[%c0, %c0_1] : memref<8x128xf32, #tpu.memory_space<vmem>>, vector<8x128xf32>
    %c0_2 = arith.constant 0 : index
    %c0_3 = arith.constant 0 : index
    %4 = vector.load %arg3[%c0_2, %c0_3] : memref<8x128xf32, #tpu.memory_space<vmem>>, vector<8x128xf32>
    %c0_4 = arith.constant 0 : index
    %c0_5 = arith.constant 0 : index
    %5 = vector.load %arg4[%c0_4, %c0_5] : memref<128x128xf32, #tpu.memory_space<vmem>>, vector<128x128xf32>
    %cst = arith.constant dense<0.000000e+00> : vector<8x128xf32>
    %6 = tpu.matmul %4, %5, %cst {dimension_numbers = #tpu.dot_dimension_numbers<[1], [0], [0], [1], [0, 0, 1, 1], [], []>} : vector<8x128xf32>, vector<128x128xf32>, vector<8x128xf32> -> vector<8x128xf32>
    %7 = arith.addf %3, %6 : vector<8x128xf32>
    %c0_6 = arith.constant 0 : index
    %c0_7 = arith.constant 0 : index
    %8 = vector.load %arg6[%c0_6, %c0_7] : memref<8x128xf32, #tpu.memory_space<vmem>>, vector<8x128xf32>
    tpu.vector_store %arg6[%c0_6, %c0_7], %7 {strides = array<i32>} : memref<8x128xf32, #tpu.memory_space<vmem>>, vector<8x128xf32>,
    return
  }
  func.func @transform_0(%arg0: i32, %arg1: i32, %arg2: i32) -> (i32, i32) {
    %c0_i32 = arith.constant 0 : i32
    return %arg1, %arg2 : i32, i32
  }
  func.func @transform_1(%arg0: i32, %arg1: i32, %arg2: i32) -> (i32, i32) {
    %c0_i32 = arith.constant 0 : i32
    return %arg2, %arg0 : i32, i32
  }
  func.func @transform_2(%arg0: i32, %arg1: i32, %arg2: i32) -> (i32, i32) {
    %c0_i32 = arith.constant 0 : i32
    %c0_i32_0 = arith.constant 0 : i32
    return %c0_i32, %arg0 : i32, i32
  }
  func.func @transform_3(%arg0: i32, %arg1: i32, %arg2: i32) -> (i32, i32) {
    %c0_i32 = arith.constant 0 : i32
    return %arg1, %arg0 : i32, i32
  }
}

</mosaic_0001>

<llo_original>
// kernel: tpu_custom_call.1
$region0: #{tpu_custom_call.1}
  #allocation0 [shape = 'u32[]', space=smem, size = 0x4, offset = 0x4, fixed_abs, tag = 'smem constant byte address 0x4 - core index']
  #allocation1 [shape = 'u32[144,128]{1,0:T(1,128)}', space=vmem, size = 0x12000, scoped, tag = 'internal scratch']
  %s0 = inlined_call_operand.hbm [shape: f32[8,128], index: 0, kind: input, shape index: {}]
  %s1 = inlined_call_operand.hbm [shape: f32[128,128], index: 1, kind: input, shape index: {}]
  %s2 = inlined_call_operand.vmem [shape: f32[1,128], index: 2, kind: input, shape index: {}]
  %s3 = inlined_call_operand.hbm [shape: f32[8,128], index: 3, kind: output, shape index: {}]
  %s4 = sld [smem:[#allocation0]]
  $region34: #{tpu_custom_call.1} parent=0
    _
  %s6 = ssub.s32 1, %s4
  %s7 = scalar_select 0, %s6, %s4
  $region1: #{tpu_custom_call.1} parent=0
    #allocation2 [shape = 'u8[4096]{0}', space=vmem, size = 0x1000, scoped, tag = 'input window, operand 0, single buffered']
    #allocation3 [shape = 's32[1]{0}', space=sflag, size = 0x4, scoped, tag = 'scoped memory for tpu_custom_call.1']
    #allocation4 [shape = 's32[1]{0}', space=sflag, size = 0x4, scoped, tag = 'scoped memory for tpu_custom_call.1']
    #allocation5 [shape = 'u8[65536]{0}', space=vmem, size = 0x10000, scoped, tag = 'input window, operand 1, single buffered']
    #allocation6 [shape = 's32[1]{0}', space=sflag, size = 0x4, scoped, tag = 'scoped memory for tpu_custom_call.1']
    #allocation7 [shape = 'u8[4096]{0}', space=vmem, size = 0x1000, scoped, tag = 'output window, operand 0, single buffered']
    %8 = vsyncpa [#allocation3], 0
    %9 = vsyncpa [#allocation6], 0
    %10 = vsyncpa [#allocation4], 0
    // Predicated region
    $region2: #{tpu_custom_call.1} parent=1 // pred_check
      _
    $region3: #{tpu_custom_call.1} parent=1 // pred_check_branch
      %12 = sbr.rel (0) target = $region5
    $region4: #{tpu_custom_call.1} parent=1 // pred_region
      %s14 = ssub.s32 128, 128
      %15 = vsyncadd [#allocation3], %s14
      %s17 = sshll.u32 [#allocation2], 4
      %s18 = int_to_ptr.vmem [resolvable:$true] %s17
      %20 = dma.hbm_to_vmem [thread:$0]  %s0, 128, %s18, [#allocation3]
    $region5: #{tpu_custom_call.1} parent=1 // pred_fallthru
      _
    // Predicated region
    $region6: #{tpu_custom_call.1} parent=1 // pred_check
      _
    $region7: #{tpu_custom_call.1} parent=1 // pred_check_branch
      %22 = sbr.rel (0) target = $region9
    $region8: #{tpu_custom_call.1} parent=1 // pred_region
      %s24 = ssub.s32 2048, 2048
      %25 = vsyncadd [#allocation6], %s24
      %s26 = sshll.u32 [#allocation5], 4
      %s27 = int_to_ptr.vmem [resolvable:$true] %s26
      %32 = dma.hbm_to_vmem [thread:$0]  %s1, 2048, %s27, [#allocation6], 128, 128, 8
    $region9: #{tpu_custom_call.1} parent=1 // pred_fallthru
      _
    // Predicated region
    $region10: #{tpu_custom_call.1} parent=1 // pred_check
      _
    $region11: #{tpu_custom_call.1} parent=1 // pred_check_branch
      %34 = sbr.rel (0) target = $region13
    $region12: #{tpu_custom_call.1} parent=1 // pred_region
      _
    $region13: #{tpu_custom_call.1} parent=1 // pred_fallthru
      _
    // Predicated region
    $region14: #{tpu_custom_call.1} parent=1 // pred_check
      _
    $region15: #{tpu_custom_call.1} parent=1 // pred_check_branch
      %36 = sbr.rel (0) target = $region17
    $region16: #{tpu_custom_call.1} parent=1 // pred_region
      %37 = dma.done [#allocation3], 128
    $region17: #{tpu_custom_call.1} parent=1 // pred_fallthru
      _
    // Predicated region
    $region18: #{tpu_custom_call.1} parent=1 // pred_check
      _
    $region19: #{tpu_custom_call.1} parent=1 // pred_check_branch
      %39 = sbr.rel (0) target = $region21
    $region20: #{tpu_custom_call.1} parent=1 // pred_region
      %40 = dma.done [#allocation6], 2048
    $region21: #{tpu_custom_call.1} parent=1 // pred_fallthru
      _
    %p41 = scmp.eq.s32.totalorder 0, 0
    // Predicated region
    $region22: #{tpu_custom_call.1} parent=1 // pred_check
      %p42 = pneg %p41
    $region23: #{tpu_custom_call.1} parent=1 // pred_check_branch
      %44 = sbr.rel (%p42) target = $region25
    $region24: #{tpu_custom_call.1} parent=1 // pred_region
      %v45 = vld [vmem:[%s2] sm:$0x1]
      %v47 = vlaneseq
      %v48 = vshrl.u32 %v47, 7
      %v49 = vsub.s32 0, %v48
      %v50 = vrot.slane %v45, %v49
      %52 = vst [vmem:[#allocation7] sm:$0xff] %v50
    $region25: #{tpu_custom_call.1} parent=1 // pred_fallthru
      _
    %v53 = vld [vmem:[#allocation7] sm:$0xff]
    %v54 = vld [vmem:[#allocation2] sm:$0xff]
    %v55 = vld [vmem:[#allocation5] sm:$0xff]
    %v56 = vld [vmem:[#allocation5 + $0x8] sm:$0xff]
    %v57 = vld [vmem:[#allocation5 + $0x10] sm:$0xff]
    %v58 = vld [vmem:[#allocation5 + $0x18] sm:$0xff]
    %v59 = vld [vmem:[#allocation5 + $0x20] sm:$0xff]
    %v60 = vld [vmem:[#allocation5 + $0x28] sm:$0xff]
    %v61 = vld [vmem:[#allocation5 + $0x30] sm:$0xff]
    %v62 = vld [vmem:[#allocation5 + $0x38] sm:$0xff]
    %v63 = vld [vmem:[#allocation5 + $0x40] sm:$0xff]
    %v64 = vld [vmem:[#allocation5 + $0x48] sm:$0xff]
    %v65 = vld [vmem:[#allocation5 + $0x50] sm:$0xff]
    %v66 = vld [vmem:[#allocation5 + $0x58] sm:$0xff]
    %v67 = vld [vmem:[#allocation5 + $0x60] sm:$0xff]
    %v68 = vld [vmem:[#allocation5 + $0x68] sm:$0xff]
    %v69 = vld [vmem:[#allocation5 + $0x70] sm:$0xff]
    %v70 = vld [vmem:[#allocation5 + $0x78] sm:$0xff]
    %71 = vmatprep.subr.mxu0 0.0
    %72 = vmatpush1.msra.mxu0 %v55
    %73 = vmatprep.subr.mxu0 0.0
    %74 = vmatpush1.msra.mxu0 %v56
    %75 = vmatprep.subr.mxu0 0.0
    %76 = vmatpush1.msra.mxu0 %v57
    %77 = vmatprep.subr.mxu0 0.0
    %78 = vmatpush1.msra.mxu0 %v58
    %79 = vmatprep.subr.mxu0 0.0
    %80 = vmatpush1.msra.mxu0 %v59
    %81 = vmatprep.subr.mxu0 0.0
    %82 = vmatpush1.msra.mxu0 %v60
    %83 = vmatprep.subr.mxu0 0.0
    %84 = vmatpush1.msra.mxu0 %v61
    %85 = vmatprep.subr.mxu0 0.0
    %86 = vmatpush1.msra.mxu0 %v62
    %87 = vmatprep.subr.mxu0 0.0
    %88 = vmatpush1.msra.mxu0 %v63
    %89 = vmatprep.subr.mxu0 0.0
    %90 = vmatpush1.msra.mxu0 %v64
    %91 = vmatprep.subr.mxu0 0.0
    %92 = vmatpush1.msra.mxu0 %v65
    %93 = vmatprep.subr.mxu0 0.0
    %94 = vmatpush1.msra.mxu0 %v66
    %95 = vmatprep.subr.mxu0 0.0
    %96 = vmatpush1.msra.mxu0 %v67
    %97 = vmatprep.subr.mxu0 0.0
    %98 = vmatpush1.msra.mxu0 %v68
    %99 = vmatprep.subr.mxu0 0.0
    %100 = vmatpush1.msra.mxu0 %v69
    %101 = vmatprep.subr.mxu0 0.0
    %102 = vmatpush1.msra.mxu0 %v70
    %103 = vmatprep.subr.mxu0 0.0
    %104 = vmatpush1.msra.mxu0 0.0
    %105 = vmatprep.subr.mxu0 0.0
    %106 = vmatpush1.msra.mxu0 0.0
    %107 = vmatprep.subr.mxu0 0.0
    %108 = vmatpush1.msra.mxu0 0.0
    %109 = vmatprep.subr.mxu0 0.0
    %110 = vmatpush1.msra.mxu0 0.0
    %111 = vmatprep.subr.mxu0 0.0
    %112 = vmatpush1.msra.mxu0 0.0
    %113 = vmatprep.subr.mxu0 0.0
    %114 = vmatpush1.msra.mxu0 0.0
    %115 = vmatprep.subr.mxu0 0.0
    %116 = vmatpush1.msra.mxu0 0.0
    %117 = vmatprep.subr.mxu0 0.0
    %118 = vmatpush1.msra.mxu0 0.0
    %119 = vmatprep.subr.mxu0 0.0
    %120 = vmatpush1.msra.mxu0 0.0
    %121 = vmatprep.subr.mxu0 0.0
    %122 = vmatpush1.msra.mxu0 0.0
    %123 = vmatprep.subr.mxu0 0.0
    %124 = vmatpush1.msra.mxu0 0.0
    %125 = vmatprep.subr.mxu0 0.0
    %126 = vmatpush1.msra.mxu0 0.0
    %127 = vmatprep.subr.mxu0 0.0
    %128 = vmatpush1.msra.mxu0 0.0
    %129 = vmatprep.subr.mxu0 0.0
    %130 = vmatpush1.msra.mxu0 0.0
    %131 = vmatprep.subr.mxu0 0.0
    %132 = vmatpush1.msra.mxu0 0.0
    %133 = vmatprep.subr.mxu0 0.0
    %134 = vmatpush1.msra.mxu0 0.0
    %135 = vmatprep.mubr.f32.mxu0 0.0
    %136 = vmatmul.mubr.f32.gmra.mrb[0].mxu0 %v54
    %v137 = vpop.f32.mrb[0].mxu0
    %v138 = vadd.f32 0.0, %v137
    %v139 = vpop.f32.mrb[0].mxu0
    %140 = vdwg.mxu0
    %v141 = vadd.f32 %v53, %v138
    %142 = vst [vmem:[#allocation7] sm:$0xff] %v141
    // Predicated region
    $region26: #{tpu_custom_call.1} parent=1 // pred_check
      _
    $region27: #{tpu_custom_call.1} parent=1 // pred_check_branch
      %144 = sbr.rel (0) target = $region29
    $region28: #{tpu_custom_call.1} parent=1 // pred_region
      %s146 = ssub.s32 128, 128
      %147 = vsyncadd [#allocation4], %s146
      %s149 = sshll.u32 [#allocation7], 4
      %s150 = int_to_ptr.vmem [resolvable:$true] %s149
      %152 = dma.vmem_to_hbm [thread:$0]  %s150, 128, %s3, [#allocation4]
    $region29: #{tpu_custom_call.1} parent=1 // pred_fallthru
      _
    // Predicated region
    $region30: #{tpu_custom_call.1} parent=1 // pred_check
      _
    $region31: #{tpu_custom_call.1} parent=1 // pred_check_branch
      %154 = sbr.rel (0) target = $region33
    $region32: #{tpu_custom_call.1} parent=1 // pred_region
      %155 = dma.done [#allocation4], 128
    $region33: #{tpu_custom_call.1} parent=1 // pred_fallthru
      _
    %156 = vsyncpa [#allocation3], 1
    %157 = vsyncpa [#allocation6], 1
    %158 = vsyncpa [#allocation4], 1

</llo_original>
